<compile_context>
chip_gen: v6e
topology: v6e:2x2x1
jax: 0.10.0
libtpu: 0.0.40
codegen_flags: <defaults>
</compile_context>

<pallas_src>
import functools

import jax
import jax.numpy as jnp
from jax.experimental import pallas as pl
from jax.experimental.pallas import tpu as pltpu

NEG_SLOPE = 0.01  # torch.nn.LeakyReLU default


def _leaky_relu(x):
    return jnp.where(x >= 0, x, NEG_SLOPE * x)


def _round_up(x, m):
    return (x + m - 1) // m * m


# ---------------------------------------------------------------------------
# Kernel
# ---------------------------------------------------------------------------
def _masked_net_kernel(inp_ref, slab_ref, out_ref, *, H, O,
                       r_w2, r_b2, r_w3, r_b3):
    x = inp_ref[...]                                   # (TB, D); col D-1 = currency id
    TB, D = x.shape

    # Mask over all D columns; the idx column's contributions are killed by
    # zero rows in the packed weights (K stays 64-lane aligned, no lane slice).
    mask = (x == 0.0).astype(jnp.float32)              # (TB, D)

    # Currency one-hot over D lanes; int truncation == torch `.long()`.
    # Out-of-range ids give an all-zero one-hot -> zero embedding + zero bias
    # (documented deviation from nn.Embedding's index error).
    idx = x[:, D - 1:D].astype(jnp.int32)              # (TB, 1)
    lane = jax.lax.broadcasted_iota(jnp.int32, (TB, D), 1)
    onehot = (idx == lane).astype(jnp.float32)         # (TB, D)

    # One TB-row MXU push for the whole MaskedLayer (+ embedding + biases):
    # block-diagonal RHS packed at param-pack time.
    lhs = jnp.concatenate([x, mask, onehot], axis=-1)  # (TB, 3D)
    w1 = slab_ref[0:3 * D, 0:3 * H]                    # (3D, 3H)
    p = jnp.dot(lhs, w1, preferred_element_type=jnp.float32)   # (TB, 3H)

    out1 = p[:, 0:H]
    interp = p[:, H:2 * H]
    mt = p[:, 2 * H:3 * H]
    h1 = _leaky_relu(out1 + interp * mt)               # (TB, H)

    # Tail computed transposed: tiny-LHS matmuls (few MXU row pushes) and a
    # lane-dense (O, TB) result -> unmasked stores + dense writeback DMA.
    w2_t = slab_ref[r_w2:r_w2 + H, 0:H]                # (H, H) = w2.T
    b2 = slab_ref[r_b2:r_b2 + H, 0:1]                  # (H, 1)
    w3_t = slab_ref[r_w3:r_w3 + O, 0:H]                # (O, H) = w3.T
    b3 = slab_ref[r_b3:r_b3 + O, 0:1]                  # (O, 1)

    # (H,H) x (TB,H) contracting both dim-1 (flash-attention NT pattern) -> (H, TB)
    h2_t = _leaky_relu(
        jax.lax.dot_general(w2_t, h1, (((1,), (1,)), ((), ())),
                            preferred_element_type=jnp.float32) + b2)
    y_t = jnp.dot(w3_t, h2_t, preferred_element_type=jnp.float32) + b3   # (O, TB)

    out_ref[...] = y_t.astype(out_ref.dtype)


# ---------------------------------------------------------------------------
# Parameters
# ---------------------------------------------------------------------------
def init_params(key, input_size, output_size, number_of_currencies):
    """Deterministic synthetic parameters (shapes match the PyTorch module).

    Linear weights are stored pre-transposed as (in, out); biases as (1, out).
    """
    d = input_size + 1        # MaskedLayer in_features
    h = input_size // 8       # hidden
    o = output_size
    ks = jax.random.split(key, 8)
    scale = lambda fan_in: 1.0 / jnp.sqrt(jnp.float32(fan_in))
    return {
        "emb": jax.random.normal(ks[0], (number_of_currencies, 2), jnp.float32),
        "w1v": jax.random.uniform(ks[1], (d, h), jnp.float32, -1, 1) * scale(d),
        "b1v": jax.random.uniform(ks[2], (1, h), jnp.float32, -1, 1) * scale(d),
        "w1i": jax.random.uniform(ks[3], (d, h), jnp.float32, -1, 1) * scale(d),
        "b1i": jax.random.uniform(ks[4], (1, h), jnp.float32, -1, 1) * scale(d),
        "w1m": 0.02 * jax.random.normal(ks[5], (d, h), jnp.float32),  # std=0.02, no bias
        "w2": jax.random.uniform(ks[6], (h, h), jnp.float32, -1, 1) * scale(h),
        "b2": jnp.zeros((1, h), jnp.float32),
        "w3": jax.random.uniform(ks[7], (h, o), jnp.float32, -1, 1) * scale(h),
        "b3": jnp.zeros((1, o), jnp.float32),
    }


def pack_params(params, input_size, output_size, num_currencies):
    """Pack every weight/bias into one 128-lane VMEM slab (off the hot path).

    First-layer block-diagonal packing (K = 3*input_size):
      rows [0, D)       cols [0,2H):  values_proj / interpolation weights for
                        the main features; row D-1 (currency column) is zero.
      rows [D, 2D)      cols [2H,3H): mask_transform weights; row 2D-1 is zero.
      rows [2D, 2D+NC)  cols [0,2H):  embedding table folded through the
                        embedding columns of values/interp + both biases.
    w2/w3 are stored transposed and b2/b3 as columns for the transposed tail.
    A pure reparametrization of the weights; forward semantics are unchanged.
    """
    F = input_size - 1
    H = input_size // 8
    O = output_size
    NC = num_currencies
    D = input_size
    assert NC <= D, "one-hot currency lanes must fit in one input-width chunk"

    w1 = jnp.zeros((3 * D, 3 * H), jnp.float32)
    w1 = w1.at[0:F, 0:H].set(params["w1v"][:F])
    w1 = w1.at[0:F, H:2 * H].set(params["w1i"][:F])
    w1 = w1.at[D:D + F, 2 * H:3 * H].set(params["w1m"][:F])
    emb_rows = (params["emb"]
                @ jnp.concatenate([params["w1v"][F:], params["w1i"][F:]], axis=1)
                + jnp.concatenate([params["b1v"], params["b1i"]], axis=1))   # (NC, 2H)
    w1 = w1.at[2 * D:2 * D + NC, 0:2 * H].set(emb_rows)

    r_w2 = 3 * D
    r_b2 = r_w2 + _round_up(H, 8)
    r_w3 = r_b2 + _round_up(H, 8)
    r_b3 = r_w3 + _round_up(O, 8)
    rows = r_b3 + _round_up(O, 8)
    lanes = _round_up(3 * H, 128)

    slab = jnp.zeros((rows, lanes), jnp.float32)
    slab = slab.at[0:3 * D, 0:3 * H].set(w1)
    slab = slab.at[r_w2:r_w2 + H, 0:H].set(params["w2"].T)
    slab = slab.at[r_b2:r_b2 + H, 0].set(params["b2"][0])
    slab = slab.at[r_w3:r_w3 + O, 0:H].set(params["w3"].T)
    slab = slab.at[r_b3:r_b3 + O, 0].set(params["b3"][0])

    layout = dict(r_w2=r_w2, r_b2=r_b2, r_w3=r_w3, r_b3=r_b3)
    return slab, layout


# ---------------------------------------------------------------------------
# Forward
# ---------------------------------------------------------------------------
def masked_net_forward(inp, slab, layout, *, input_size, output_size,
                       num_currencies):
    """inp: (B, input_size) float32; last column holds currency indices."""
    del num_currencies  # folded into the slab at pack time
    B = inp.shape[0]
    H = input_size // 8
    O = output_size

    # --- batch tiling -------------------------------------------------------
    # Largest tile that divides B, capped at 4096 rows: big enough to amortize
    # the ~0.35us/step pipeline overhead against ~1 MiB of input DMA, small
    # enough that double-buffered input + 128-lane-padded intermediates stay
    # well under v7x's 64 MiB VMEM (default scoped limit untouched).  Odd
    # large batches are row-padded rather than using one giant block.
    Bp, tb = B, None
    for cand in (4096, 2048, 1024, 512, 256, 128):
        if B % cand == 0:
            tb = cand
            break
    if tb is None:
        if B <= 4096:
            tb = B                                  # single full-dim block
        else:
            tb = 4096
            Bp = pl.cdiv(B, tb) * tb
            inp = jnp.pad(inp, ((0, Bp - B), (0, 0)))
    grid = (Bp // tb,)

    kernel = functools.partial(
        _masked_net_kernel, H=H, O=O,
        r_w2=layout["r_w2"], r_b2=layout["r_b2"],
        r_w3=layout["r_w3"], r_b3=layout["r_b3"])

    out_t = pl.pallas_call(
        kernel,
        out_shape=jax.ShapeDtypeStruct((O, Bp), jnp.float32),
        grid=grid,
        in_specs=[
            pl.BlockSpec((tb, input_size), lambda i: (i, 0)),
            # constant index_map -> slab stays resident across grid steps
            pl.BlockSpec(slab.shape, lambda i: (0, 0)),
        ],
        # transposed, lane-dense output block (last dim = tb >= 128 when tiled)
        out_specs=pl.BlockSpec((O, tb), lambda i: (0, i)),
        compiler_params=pltpu.CompilerParams(
            # megacore: both v7x TensorCores engage only with >= 2 grid steps
            dimension_semantics=("parallel",)),
    )(inp, slab)

    # Un-transpose the small (O, B) result. targets is None here -> (output, None).
    # TODO(synk): L1-loss / clean_dataset loss branches are not implemented.
    return out_t[:, :B].T, None


def masked_net_reference(inp, params):
    """Plain-JAX reference mirroring the PyTorch forward (for validation)."""
    main = inp[:, :-1]
    mask = (main == 0).astype(jnp.float32)
    idx = inp[:, -1].astype(jnp.int32)
    emb = jnp.take(params["emb"], idx, axis=0)
    v = jnp.concatenate([main, emb], axis=1)
    m = jnp.concatenate([mask, jnp.zeros((mask.shape[0], 2), jnp.float32)], axis=1)
    out1 = v @ params["w1v"] + params["b1v"]
    interp = v @ params["w1i"] + params["b1i"]
    mt = m @ params["w1m"]
    x = _leaky_relu(out1 + interp * mt)
    x = _leaky_relu(x @ params["w2"] + params["b2"])
    return x @ params["w3"] + params["b3"]


if __name__ == "__main__":
    INPUT_SIZE = 64            # last column = currency index (stored as float)
    OUTPUT_SIZE = 8
    NUM_CURRENCIES = 4

    key = jax.random.PRNGKey(0)
    k_param, k_feat, k_zero, k_idx = jax.random.split(key, 4)

    params = init_params(k_param, INPUT_SIZE, OUTPUT_SIZE, NUM_CURRENCIES)
    slab, layout = pack_params(params, INPUT_SIZE, OUTPUT_SIZE, NUM_CURRENCIES)

    def make_batch(kf, kz, ki, batch):
        feats = jax.random.normal(kf, (batch, INPUT_SIZE - 1), jnp.float32)
        zero_mask = jax.random.bernoulli(kz, 0.3, feats.shape)
        feats = jnp.where(zero_mask, 0.0, feats)      # exact zeros -> mask path
        idx = jax.random.randint(ki, (batch,), 0, NUM_CURRENCIES)
        return jnp.concatenate([feats, idx[:, None].astype(jnp.float32)], axis=1)

    # Small-shape check (B=8): single block, single grid step.
    x_small = make_batch(k_feat, k_zero, k_idx, 8)
    out, loss = masked_net_forward(
        x_small, slab, layout, input_size=INPUT_SIZE, output_size=OUTPUT_SIZE,
        num_currencies=NUM_CURRENCIES)
    out = jax.block_until_ready(out)
    ref = masked_net_reference(x_small, params)
    assert out.shape == (8, OUTPUT_SIZE) and loss is None
    assert bool(jnp.allclose(out, ref, atol=1e-2, rtol=1e-2)), "mismatch (B=8)"

    # Larger batch: exercises the 4096-row tiles, the 2-step parallel grid and
    # the lane-dense transposed-output stitching.
    kf2, kz2, ki2 = jax.random.split(jax.random.PRNGKey(1), 3)
    x_big = make_batch(kf2, kz2, ki2, 8192)
    out_big, _ = masked_net_forward(
        x_big, slab, layout, input_size=INPUT_SIZE, output_size=OUTPUT_SIZE,
        num_currencies=NUM_CURRENCIES)
    out_big = jax.block_until_ready(out_big)
    ref_big = masked_net_reference(x_big, params)
    assert out_big.shape == (8192, OUTPUT_SIZE)
    assert bool(jnp.allclose(out_big, ref_big, atol=1e-2, rtol=1e-2)), "mismatch (B=8192)"

    print("KERNEL_OK")
</pallas_src>

<mosaic_0001>
module attributes {stable_mosaic.version = 11 : i64} {
  func.func @_masked_net_kernel(%arg0: i32, %arg1: memref<8x64xf32, #tpu.memory_space<vmem>>, %arg2: memref<224x128xf32, #tpu.memory_space<vmem>>, %arg3: memref<8x8xf32, #tpu.memory_space<vmem>>) attributes {dimension_semantics = [#tpu.dimension_semantics<parallel>], iteration_bounds = array<i64: 1>, scalar_prefetch = 0 : i64, scratch_operands = 0 : i64, tpu.core_type = #tpu.core_type<tc>, window_params = [{transform_indices = @transform_0, window_bounds = array<i64: 8, 64>}, {pipeline_mode = #tpu.pipeline_mode<synchronous>, transform_indices = @transform_1, window_bounds = array<i64: 224, 128>}, {transform_indices = @transform_2, window_bounds = array<i64: 8, 8>}]} {
    %c0 = arith.constant 0 : index
    %c0_0 = arith.constant 0 : index
    %0 = vector.load %arg1[%c0, %c0_0] : memref<8x64xf32, #tpu.memory_space<vmem>>, vector<8x64xf32>
    %cst = arith.constant 0.000000e+00 : f32
    %1 = vector.broadcast %cst : f32 to vector<8x64xf32>
    %2 = arith.cmpf oeq, %0, %1 : vector<8x64xf32>
    %3 = arith.extui %2 : vector<8x64xi1> to vector<8x64xi32>
    %4 = arith.sitofp %3 : vector<8x64xi32> to vector<8x64xf32>
    %5 = vector.extract_strided_slice %0 {offsets = [0, 63], sizes = [8, 1], strides = [1, 1]} : vector<8x64xf32> to vector<8x1xf32>
    %6 = arith.fptosi %5 : vector<8x1xf32> to vector<8x1xi32>
    %7 = tpu.iota {dimensions = array<i32: 1>} : vector<8x64xi32>
    %8 = vector.broadcast %6 : vector<8x1xi32> to vector<8x64xi32>
    %9 = arith.cmpi eq, %8, %7 : vector<8x64xi32>
    %10 = arith.extui %9 : vector<8x64xi1> to vector<8x64xi32>
    %11 = arith.sitofp %10 : vector<8x64xi32> to vector<8x64xf32>
    %12 = tpu.concatenate %0, %4, %11 in 1 : vector<8x64xf32>, vector<8x64xf32>, vector<8x64xf32> -> vector<8x192xf32>
    %c0_1 = arith.constant 0 : index
    %c0_2 = arith.constant 0 : index
    %13 = vector.load %arg2[%c0_1, %c0_2] : memref<224x128xf32, #tpu.memory_space<vmem>>, vector<192x24xf32>
    %cst_3 = arith.constant dense<0.000000e+00> : vector<8x24xf32>
    %14 = tpu.matmul %12, %13, %cst_3 {dimension_numbers = #tpu.dot_dimension_numbers<[1], [0], [0], [1], [0, 0, 1, 1], [], []>} : vector<8x192xf32>, vector<192x24xf32>, vector<8x24xf32> -> vector<8x24xf32>
    %15 = vector.extract_strided_slice %14 {offsets = [0, 0], sizes = [8, 8], strides = [1, 1]} : vector<8x24xf32> to vector<8x8xf32>
    %16 = vector.extract_strided_slice %14 {offsets = [0, 8], sizes = [8, 8], strides = [1, 1]} : vector<8x24xf32> to vector<8x8xf32>
    %17 = vector.extract_strided_slice %14 {offsets = [0, 16], sizes = [8, 8], strides = [1, 1]} : vector<8x24xf32> to vector<8x8xf32>
    %18 = arith.mulf %16, %17 : vector<8x8xf32>
    %19 = arith.addf %15, %18 : vector<8x8xf32>
    %cst_4 = arith.constant 0.000000e+00 : f32
    %20 = vector.broadcast %cst_4 : f32 to vector<8x8xf32>
    %21 = arith.cmpf oge, %19, %20 : vector<8x8xf32>
    %cst_5 = arith.constant 0.00999999977 : f32
    %22 = vector.broadcast %cst_5 : f32 to vector<8x8xf32>
    %23 = arith.mulf %22, %19 : vector<8x8xf32>
    %24 = arith.select %21, %19, %23 : vector<8x8xi1>, vector<8x8xf32>
    %c192 = arith.constant 192 : index
    %c0_6 = arith.constant 0 : index
    %25 = vector.load %arg2[%c192, %c0_6] : memref<224x128xf32, #tpu.memory_space<vmem>>, vector<8x8xf32>
    %c200 = arith.constant 200 : index
    %c0_7 = arith.constant 0 : index
    %26 = vector.load %arg2[%c200, %c0_7] : memref<224x128xf32, #tpu.memory_space<vmem>>, vector<8x1xf32>
    %c208 = arith.constant 208 : index
    %c0_8 = arith.constant 0 : index
    %27 = vector.load %arg2[%c208, %c0_8] : memref<224x128xf32, #tpu.memory_space<vmem>>, vector<8x8xf32>
    %c216 = arith.constant 216 : index
    %c0_9 = arith.constant 0 : index
    %28 = vector.load %arg2[%c216, %c0_9] : memref<224x128xf32, #tpu.memory_space<vmem>>, vector<8x1xf32>
    %cst_10 = arith.constant dense<0.000000e+00> : vector<8x8xf32>
    %29 = tpu.matmul %25, %24, %cst_10 {dimension_numbers = #tpu.dot_dimension_numbers<[1], [1], [0], [0], [0, 0, 1, 0], [], []>} : vector<8x8xf32>, vector<8x8xf32>, vector<8x8xf32> -> vector<8x8xf32>
    %30 = vector.broadcast %26 : vector<8x1xf32> to vector<8x8xf32>
    %31 = arith.addf %29, %30 : vector<8x8xf32>
    %cst_11 = arith.constant 0.000000e+00 : f32
    %32 = vector.broadcast %cst_11 : f32 to vector<8x8xf32>
    %33 = arith.cmpf oge, %31, %32 : vector<8x8xf32>
    %cst_12 = arith.constant 0.00999999977 : f32
    %34 = vector.broadcast %cst_12 : f32 to vector<8x8xf32>
    %35 = arith.mulf %34, %31 : vector<8x8xf32>
    %36 = arith.select %33, %31, %35 : vector<8x8xi1>, vector<8x8xf32>
    %cst_13 = arith.constant dense<0.000000e+00> : vector<8x8xf32>
    %37 = tpu.matmul %27, %36, %cst_13 {dimension_numbers = #tpu.dot_dimension_numbers<[1], [0], [0], [1], [0, 0, 1, 1], [], []>} : vector<8x8xf32>, vector<8x8xf32>, vector<8x8xf32> -> vector<8x8xf32>
    %38 = vector.broadcast %28 : vector<8x1xf32> to vector<8x8xf32>
    %39 = arith.addf %37, %38 : vector<8x8xf32>
    %c0_14 = arith.constant 0 : index
    %c0_15 = arith.constant 0 : index
    %40 = vector.load %arg3[%c0_14, %c0_15] : memref<8x8xf32, #tpu.memory_space<vmem>>, vector<8x8xf32>
    tpu.vector_store %arg3[%c0_14, %c0_15], %39 {strides = array<i32>} : memref<8x8xf32, #tpu.memory_space<vmem>>, vector<8x8xf32>,
    return
  }
  func.func @transform_0(%arg0: i32) -> (i32, i32) {
    %c0_i32 = arith.constant 0 : i32
    %c0_i32_0 = arith.constant 0 : i32
    return %arg0, %c0_i32 : i32, i32
  }
  func.func @transform_1(%arg0: i32) -> (i32, i32) {
    %c0_i32 = arith.constant 0 : i32
    %c0_i32_0 = arith.constant 0 : i32
    %c0_i32_1 = arith.constant 0 : i32
    return %c0_i32, %c0_i32_0 : i32, i32
  }
  func.func @transform_2(%arg0: i32) -> (i32, i32) {
    %c0_i32 = arith.constant 0 : i32
    %c0_i32_0 = arith.constant 0 : i32
    return %c0_i32, %arg0 : i32, i32
  }
}

</mosaic_0001>

<llo_original>
// kernel: tpu_custom_call.1
$region0: #{tpu_custom_call.1}
  #allocation0 [shape = 'u32[]', space=smem, size = 0x4, offset = 0x4, fixed_abs, tag = 'smem constant byte address 0x4 - core index']
  #allocation1 [shape = 'u32[144,128]{1,0:T(1,128)}', space=vmem, size = 0x12000, scoped, tag = 'internal scratch']
  %s0 = inlined_call_operand.hbm [shape: f32[8,64], index: 0, kind: input, shape index: {}]
  %s1 = inlined_call_operand.hbm [shape: f32[224,128], index: 1, kind: input, shape index: {}]
  %s2 = inlined_call_operand.hbm [shape: f32[8,8], index: 2, kind: output, shape index: {}]
  %s3 = sld [smem:[#allocation0]]
  $region26: #{tpu_custom_call.1} parent=0
    _
  %s5 = ssub.s32 1, %s3
  %s6 = scalar_select 0, %s5, %s3
  $region1: #{tpu_custom_call.1} parent=0
    #allocation2 [shape = 'u8[4096]{0}', space=vmem, size = 0x1000, scoped, tag = 'input window, operand 0, single buffered']
    #allocation3 [shape = 's32[1]{0}', space=sflag, size = 0x4, scoped, tag = 'scoped memory for tpu_custom_call.1']
    #allocation4 [shape = 's32[1]{0}', space=sflag, size = 0x4, scoped, tag = 'scoped memory for tpu_custom_call.1']
    #allocation5 [shape = 'u8[114688]{0}', space=vmem, size = 0x1c000, scoped, tag = 'input window, operand 1, single buffered']
    #allocation6 [shape = 's32[1]{0}', space=sflag, size = 0x4, scoped, tag = 'scoped memory for tpu_custom_call.1']
    #allocation7 [shape = 'u8[4096]{0}', space=vmem, size = 0x1000, scoped, tag = 'output window, operand 0, single buffered']
    %7 = vsyncpa [#allocation3], 0
    %8 = vsyncpa [#allocation6], 0
    %9 = vsyncpa [#allocation4], 0
    // Predicated region
    $region2: #{tpu_custom_call.1} parent=1 // pred_check
      _
    $region3: #{tpu_custom_call.1} parent=1 // pred_check_branch
      %11 = sbr.rel (0) target = $region5
    $region4: #{tpu_custom_call.1} parent=1 // pred_region
      %s13 = ssub.s32 128, 128
      %14 = vsyncadd [#allocation3], %s13
      %s16 = sshll.u32 [#allocation2], 4
      %s17 = int_to_ptr.vmem [resolvable:$true] %s16
      %19 = dma.hbm_to_vmem [thread:$0]  %s0, 128, %s17, [#allocation3]
    $region5: #{tpu_custom_call.1} parent=1 // pred_fallthru
      _
    // Predicated region
    $region6: #{tpu_custom_call.1} parent=1 // pred_check
      _
    $region7: #{tpu_custom_call.1} parent=1 // pred_check_branch
      %21 = sbr.rel (0) target = $region9
    $region8: #{tpu_custom_call.1} parent=1 // pred_region
      %s23 = ssub.s32 3584, 3584
      %24 = vsyncadd [#allocation6], %s23
      %s25 = sshll.u32 [#allocation5], 4
      %s26 = int_to_ptr.vmem [resolvable:$true] %s25
      %31 = dma.hbm_to_vmem [thread:$0]  %s1, 3584, %s26, [#allocation6], 128, 128, 8
    $region9: #{tpu_custom_call.1} parent=1 // pred_fallthru
      _
    // Predicated region
    $region10: #{tpu_custom_call.1} parent=1 // pred_check
      _
    $region11: #{tpu_custom_call.1} parent=1 // pred_check_branch
      %33 = sbr.rel (0) target = $region13
    $region12: #{tpu_custom_call.1} parent=1 // pred_region
      %34 = dma.done [#allocation3], 128
    $region13: #{tpu_custom_call.1} parent=1 // pred_fallthru
      _
    // Predicated region
    $region14: #{tpu_custom_call.1} parent=1 // pred_check
      _
    $region15: #{tpu_custom_call.1} parent=1 // pred_check_branch
      %36 = sbr.rel (0) target = $region17
    $region16: #{tpu_custom_call.1} parent=1 // pred_region
      %37 = dma.done [#allocation6], 3584
    $region17: #{tpu_custom_call.1} parent=1 // pred_fallthru
      _
    %v38 = vld [vmem:[#allocation2] sm:$0xff]
    %vm39 = vcmp.eq.f32.partialorder %v38, 0.0
    %v40 = vsel %vm39, 1, 0
    %v41 = vcvt.s32.f32 %v40
    %v42 = vcvt.f32.s32.to.zero.pseudo %v38
    %v43 = vlaneseq
    %v44 = vand.u32 %v43, 127
    %45 = vset.pattern.permute.xlu0 63
    %46 = vperm.xlu0 %45, %v42
    %v47 = vpop.permute.xlu0 %46
    %vm48 = vcmp.eq.s32.totalorder %v47, %v44
    %v49 = vsel %vm48, 1, 0
    %v50 = vcvt.s32.f32 %v49
    %52 = vrot.lane.b32.xlu0 %v41, 64
    %v53 = vpop.permute.xlu0 %52
    %vm55 = vcmask 523264
    %v56 = vsel %vm55, %v38, %v53
    %v57 = vld [vmem:[#allocation5] sm:$0xff]
    %v58 = vld [vmem:[#allocation5 + $0x8] sm:$0xff]
    %v59 = vld [vmem:[#allocation5 + $0x10] sm:$0xff]
    %v60 = vld [vmem:[#allocation5 + $0x18] sm:$0xff]
    %v61 = vld [vmem:[#allocation5 + $0x20] sm:$0xff]
    %v62 = vld [vmem:[#allocation5 + $0x28] sm:$0xff]
    %v63 = vld [vmem:[#allocation5 + $0x30] sm:$0xff]
    %v64 = vld [vmem:[#allocation5 + $0x38] sm:$0xff]
    %v65 = vld [vmem:[#allocation5 + $0x40] sm:$0xff]
    %v66 = vld [vmem:[#allocation5 + $0x48] sm:$0xff]
    %v67 = vld [vmem:[#allocation5 + $0x50] sm:$0xff]
    %v68 = vld [vmem:[#allocation5 + $0x58] sm:$0xff]
    %v69 = vld [vmem:[#allocation5 + $0x60] sm:$0xff]
    %v70 = vld [vmem:[#allocation5 + $0x68] sm:$0xff]
    %v71 = vld [vmem:[#allocation5 + $0x70] sm:$0xff]
    %v72 = vld [vmem:[#allocation5 + $0x78] sm:$0xff]
    %v73 = vld [vmem:[#allocation5 + $0x80] sm:$0xff]
    %v74 = vld [vmem:[#allocation5 + $0x88] sm:$0xff]
    %v75 = vld [vmem:[#allocation5 + $0x90] sm:$0xff]
    %v76 = vld [vmem:[#allocation5 + $0x98] sm:$0xff]
    %v77 = vld [vmem:[#allocation5 + $0xa0] sm:$0xff]
    %v78 = vld [vmem:[#allocation5 + $0xa8] sm:$0xff]
    %v79 = vld [vmem:[#allocation5 + $0xb0] sm:$0xff]
    %v80 = vld [vmem:[#allocation5 + $0xb8] sm:$0xff]
    %v82 = vsel %vm55, %v50, 0
    %84 = vmatprep.subr.mxu0 0.0
    %85 = vmatpush1.msra.mxu0 %v72
    %86 = vmatprep.subr.mxu0 0.0
    %87 = vmatpush1.msra.mxu0 %v71
    %88 = vmatprep.subr.mxu0 0.0
    %89 = vmatpush1.msra.mxu0 %v70
    %90 = vmatprep.subr.mxu0 0.0
    %91 = vmatpush1.msra.mxu0 %v69
    %92 = vmatprep.subr.mxu0 0.0
    %93 = vmatpush1.msra.mxu0 %v68
    %94 = vmatprep.subr.mxu0 0.0
    %95 = vmatpush1.msra.mxu0 %v67
    %96 = vmatprep.subr.mxu0 0.0
    %97 = vmatpush1.msra.mxu0 %v66
    %98 = vmatprep.subr.mxu0 0.0
    %99 = vmatpush1.msra.mxu0 %v65
    %100 = vmatprep.subr.mxu0 0.0
    %101 = vmatpush1.msra.mxu0 %v64
    %102 = vmatprep.subr.mxu0 0.0
    %103 = vmatpush1.msra.mxu0 %v63
    %104 = vmatprep.subr.mxu0 0.0
    %105 = vmatpush1.msra.mxu0 %v62
    %106 = vmatprep.subr.mxu0 0.0
    %107 = vmatpush1.msra.mxu0 %v61
    %108 = vmatprep.subr.mxu0 0.0
    %109 = vmatpush1.msra.mxu0 %v60
    %110 = vmatprep.subr.mxu0 0.0
    %111 = vmatpush1.msra.mxu0 %v59
    %112 = vmatprep.subr.mxu0 0.0
    %113 = vmatpush1.msra.mxu0 %v58
    %114 = vmatprep.subr.mxu0 0.0
    %115 = vmatpush1.msra.mxu0 %v57
    %116 = vmatprep.subr.mxu0 0.0
    %117 = vmatpush2.msra.mxu0 0.0
    %118 = vmatprep.subr.mxu0 0.0
    %119 = vmatpush2.msra.mxu0 0.0
    %120 = vmatprep.subr.mxu0 0.0
    %121 = vmatpush2.msra.mxu0 0.0
    %122 = vmatprep.subr.mxu0 0.0
    %123 = vmatpush2.msra.mxu0 0.0
    %124 = vmatprep.subr.mxu0 0.0
    %125 = vmatpush2.msra.mxu0 0.0
    %126 = vmatprep.subr.mxu0 0.0
    %127 = vmatpush2.msra.mxu0 0.0
    %128 = vmatprep.subr.mxu0 0.0
    %129 = vmatpush2.msra.mxu0 0.0
    %130 = vmatprep.subr.mxu0 0.0
    %131 = vmatpush2.msra.mxu0 0.0
    %132 = vmatprep.subr.mxu0 0.0
    %133 = vmatpush2.msra.mxu0 %v80
    %134 = vmatprep.subr.mxu0 0.0
    %135 = vmatpush2.msra.mxu0 %v79
    %136 = vmatprep.subr.mxu0 0.0
    %137 = vmatpush2.msra.mxu0 %v78
    %138 = vmatprep.subr.mxu0 0.0
    %139 = vmatpush2.msra.mxu0 %v77
    %140 = vmatprep.subr.mxu0 0.0
    %141 = vmatpush2.msra.mxu0 %v76
    %142 = vmatprep.subr.mxu0 0.0
    %143 = vmatpush2.msra.mxu0 %v75
    %144 = vmatprep.subr.mxu0 0.0
    %145 = vmatpush2.msra.mxu0 %v74
    %146 = vmatprep.subr.mxu0 0.0
    %147 = vmatpush2.msra.mxu0 %v73
    %148 = vmatprep.mubr.f32.mxu0 %v82
    %149 = vmatmul.mubr.f32.gmra.mxu0 %v56
    %v150 = vpop.f32.mrf.mxu0
    %v151 = vadd.f32 0.0, %v150
    %v152 = vpop.f32.mrf.mxu0
    %153 = vdwg.mxu0
    %155 = vrot.lane.b32.xlu0 %v151, 120
    %v156 = vpop.permute.xlu0 %155
    %v158 = vmul.f32 %v151, %v156
    %160 = vrot.lane.b32.xlu0 %v158, 120
    %v161 = vpop.permute.xlu0 %160
    %v163 = vadd.f32 %v151, %v161
    %vm164 = vcmp.ge.f32.partialorder %v163, 0.0
    %v165 = vmul.f32 %v163, 0.01
    %v166 = vsel %vm164, %v163, %v165
    %v167 = vld [vmem:[#allocation5 + $0xc0] sm:$0xff]
    %v168 = vld [vmem:[#allocation5 + $0xc8] sm:$0xff]
    %v169 = vld [vmem:[#allocation5 + $0xd0] sm:$0xff]
    %v170 = vld [vmem:[#allocation5 + $0xd8] sm:$0xff]
    %172 = vset.pattern.permute.xlu0 0
    %173 = vperm.xlu0 %172, %v168
    %v174 = vpop.permute.xlu0 %173
    %vm176 = vcmask 64512
    %v178 = vsel %vm176, %v167, 0
    %v181 = vsel %vm176, %v166, 0
    %183 = vmatprep.subr.mxu0 0.0
    %184 = vmatpush1.xpose.msra.mxu0 0.0
    %185 = vmatprep.subr.mxu0 0.0
    %186 = vmatpush1.xpose.msra.mxu0 0.0
    %187 = vmatprep.subr.mxu0 0.0
    %188 = vmatpush1.xpose.msra.mxu0 0.0
    %189 = vmatprep.subr.mxu0 0.0
    %190 = vmatpush1.xpose.msra.mxu0 0.0
    %191 = vmatprep.subr.mxu0 0.0
    %192 = vmatpush1.xpose.msra.mxu0 0.0
    %193 = vmatprep.subr.mxu0 0.0
    %194 = vmatpush1.xpose.msra.mxu0 0.0
    %195 = vmatprep.subr.mxu0 0.0
    %196 = vmatpush1.xpose.msra.mxu0 0.0
    %197 = vmatprep.subr.mxu0 0.0
    %198 = vmatpush1.xpose.msra.mxu0 0.0
    %199 = vmatprep.subr.mxu0 0.0
    %200 = vmatpush1.xpose.msra.mxu0 0.0
    %201 = vmatprep.subr.mxu0 0.0
    %202 = vmatpush1.xpose.msra.mxu0 0.0
    %203 = vmatprep.subr.mxu0 0.0
    %204 = vmatpush1.xpose.msra.mxu0 0.0
    %205 = vmatprep.subr.mxu0 0.0
    %206 = vmatpush1.xpose.msra.mxu0 0.0
    %207 = vmatprep.subr.mxu0 0.0
    %208 = vmatpush1.xpose.msra.mxu0 0.0
    %209 = vmatprep.subr.mxu0 0.0
    %210 = vmatpush1.xpose.msra.mxu0 0.0
    %211 = vmatprep.subr.mxu0 0.0
    %212 = vmatpush1.xpose.msra.mxu0 0.0
    %213 = vmatprep.subr.mxu0 0.0
    %214 = vmatpush1.xpose.msra.mxu0 %v181
    %215 = vmatprep.subr.mxu0 0.0
    %216 = vmatpush2.xpose.msra.mxu0 0.0
    %217 = vmatprep.subr.mxu0 0.0
    %218 = vmatpush2.xpose.msra.mxu0 0.0
    %219 = vmatprep.subr.mxu0 0.0
    %220 = vmatpush2.xpose.msra.mxu0 0.0
    %221 = vmatprep.subr.mxu0 0.0
    %222 = vmatpush2.xpose.msra.mxu0 0.0
    %223 = vmatprep.subr.mxu0 0.0
    %224 = vmatpush2.xpose.msra.mxu0 0.0
    %225 = vmatprep.subr.mxu0 0.0
    %226 = vmatpush2.xpose.msra.mxu0 0.0
    %227 = vmatprep.subr.mxu0 0.0
    %228 = vmatpush2.xpose.msra.mxu0 0.0
    %229 = vmatprep.subr.mxu0 0.0
    %230 = vmatpush2.xpose.msra.mxu0 0.0
    %231 = vmatprep.subr.mxu0 0.0
    %232 = vmatpush2.xpose.msra.mxu0 0.0
    %233 = vmatprep.subr.mxu0 0.0
    %234 = vmatpush2.xpose.msra.mxu0 0.0
    %235 = vmatprep.subr.mxu0 0.0
    %236 = vmatpush2.xpose.msra.mxu0 0.0
    %237 = vmatprep.subr.mxu0 0.0
    %238 = vmatpush2.xpose.msra.mxu0 0.0
    %239 = vmatprep.subr.mxu0 0.0
    %240 = vmatpush2.xpose.msra.mxu0 0.0
    %241 = vmatprep.subr.mxu0 0.0
    %242 = vmatpush2.xpose.msra.mxu0 0.0
    %243 = vmatprep.subr.mxu0 0.0
    %244 = vmatpush2.xpose.msra.mxu0 0.0
    %245 = vmatprep.subr.mxu0 0.0
    %246 = vmatpush2.xpose.msra.mxu0 0.0
    %247 = vmatprep.mubr.f32.mxu0 0.0
    %248 = vmatmul.mubr.f32.gmra.mxu0 %v178
    %v249 = vpop.f32.mrf.mxu0
    %v250 = vadd.f32 %v174, %v249
    %v251 = vpop.f32.mrf.mxu0
    %252 = vdwg.mxu0
    %vm253 = vcmp.ge.f32.partialorder %v250, 0.0
    %v254 = vmul.f32 %v250, 0.01
    %v255 = vsel %vm253, %v250, %v254
    %257 = vset.pattern.permute.xlu0 0
    %258 = vperm.xlu0 %257, %v170
    %v259 = vpop.permute.xlu0 %258
    %v262 = vsel %vm176, %v169, 0
    %264 = vmatprep.subr.mxu0 0.0
    %265 = vmatpush1.msra.mxu0 0.0
    %266 = vmatprep.subr.mxu0 0.0
    %267 = vmatpush1.msra.mxu0 0.0
    %268 = vmatprep.subr.mxu0 0.0
    %269 = vmatpush1.msra.mxu0 0.0
    %270 = vmatprep.subr.mxu0 0.0
    %271 = vmatpush1.msra.mxu0 0.0
    %272 = vmatprep.subr.mxu0 0.0
    %273 = vmatpush1.msra.mxu0 0.0
    %274 = vmatprep.subr.mxu0 0.0
    %275 = vmatpush1.msra.mxu0 0.0
    %276 = vmatprep.subr.mxu0 0.0
    %277 = vmatpush1.msra.mxu0 0.0
    %278 = vmatprep.subr.mxu0 0.0
    %279 = vmatpush1.msra.mxu0 0.0
    %280 = vmatprep.subr.mxu0 0.0
    %281 = vmatpush1.msra.mxu0 0.0
    %282 = vmatprep.subr.mxu0 0.0
    %283 = vmatpush1.msra.mxu0 0.0
    %284 = vmatprep.subr.mxu0 0.0
    %285 = vmatpush1.msra.mxu0 0.0
    %286 = vmatprep.subr.mxu0 0.0
    %287 = vmatpush1.msra.mxu0 0.0
    %288 = vmatprep.subr.mxu0 0.0
    %289 = vmatpush1.msra.mxu0 0.0
    %290 = vmatprep.subr.mxu0 0.0
    %291 = vmatpush1.msra.mxu0 0.0
    %292 = vmatprep.subr.mxu0 0.0
    %293 = vmatpush1.msra.mxu0 0.0
    %294 = vmatprep.subr.mxu0 0.0
    %295 = vmatpush1.msra.mxu0 %v255
    %296 = vmatprep.subr.mxu0 0.0
    %297 = vmatpush2.msra.mxu0 0.0
    %298 = vmatprep.subr.mxu0 0.0
    %299 = vmatpush2.msra.mxu0 0.0
    %300 = vmatprep.subr.mxu0 0.0
    %301 = vmatpush2.msra.mxu0 0.0
    %302 = vmatprep.subr.mxu0 0.0
    %303 = vmatpush2.msra.mxu0 0.0
    %304 = vmatprep.subr.mxu0 0.0
    %305 = vmatpush2.msra.mxu0 0.0
    %306 = vmatprep.subr.mxu0 0.0
    %307 = vmatpush2.msra.mxu0 0.0
    %308 = vmatprep.subr.mxu0 0.0
    %309 = vmatpush2.msra.mxu0 0.0
    %310 = vmatprep.subr.mxu0 0.0
    %311 = vmatpush2.msra.mxu0 0.0
    %312 = vmatprep.subr.mxu0 0.0
    %313 = vmatpush2.msra.mxu0 0.0
    %314 = vmatprep.subr.mxu0 0.0
    %315 = vmatpush2.msra.mxu0 0.0
    %316 = vmatprep.subr.mxu0 0.0
    %317 = vmatpush2.msra.mxu0 0.0
    %318 = vmatprep.subr.mxu0 0.0
    %319 = vmatpush2.msra.mxu0 0.0
    %320 = vmatprep.subr.mxu0 0.0
    %321 = vmatpush2.msra.mxu0 0.0
    %322 = vmatprep.subr.mxu0 0.0
    %323 = vmatpush2.msra.mxu0 0.0
    %324 = vmatprep.subr.mxu0 0.0
    %325 = vmatpush2.msra.mxu0 0.0
    %326 = vmatprep.subr.mxu0 0.0
    %327 = vmatpush2.msra.mxu0 0.0
    %328 = vmatprep.mubr.f32.mxu0 0.0
    %329 = vmatmul.mubr.f32.gmra.mxu0 %v262
    %v330 = vpop.f32.mrf.mxu0
    %v331 = vadd.f32 %v259, %v330
    %v332 = vpop.f32.mrf.mxu0
    %333 = vdwg.mxu0
    %334 = vst.msk [vmem:[#allocation7] sm:$0xff] %vm176, %v331
    // Predicated region
    $region18: #{tpu_custom_call.1} parent=1 // pred_check
      _
    $region19: #{tpu_custom_call.1} parent=1 // pred_check_branch
      %336 = sbr.rel (0) target = $region21
    $region20: #{tpu_custom_call.1} parent=1 // pred_region
      %s338 = ssub.s32 128, 128
      %339 = vsyncadd [#allocation4], %s338
      %s341 = sshll.u32 [#allocation7], 4
      %s342 = int_to_ptr.vmem [resolvable:$true] %s341
      %344 = dma.vmem_to_hbm [thread:$0]  %s342, 128, %s2, [#allocation4]
    $region21: #{tpu_custom_call.1} parent=1 // pred_fallthru
      _
    // Predicated region
    $region22: #{tpu_custom_call.1} parent=1 // pred_check
      _
    $region23: #{tpu_custom_call.1} parent=1 // pred_check_branch
      %346 = sbr.rel (0) target = $region25
    $region24: #{tpu_custom_call.1} parent=1 // pred_region
      %347 = dma.done [#allocation4], 128
    $region25: #{tpu_custom_call.1} parent=1 // pred_fallthru
      _
    %348 = vsyncpa [#allocation3], 1
    %349 = vsyncpa [#allocation6], 1
    %350 = vsyncpa [#allocation4], 1

</llo_original>
